<compile_context>
chip_gen: v6e
topology: v6e:2x2x1
jax: 0.10.0
libtpu: 0.0.40
codegen_flags: <defaults>
</compile_context>

<pallas_src>
import functools

import numpy as np
import jax
import jax.numpy as jnp
from jax.experimental import pallas as pl
from jax.experimental.pallas import tpu as pltpu


def _round_up(v, m):
    return (v + m - 1) // m * m


# ----------------------------- Pallas kernel ------------------------------ #

def _contrast_kernel(x_ref, gid_ref, coef_ref, w1_ref, b1_ref, w2_ref, b2_ref,
                     ybar_ref, loss_ref, diff_acc, *, n_classes, n_groups):
    i = pl.program_id(0)

    # ---- init accumulator on the first N-tile ----------------------------- #
    @pl.when(i == 0)
    def _():
        diff_acc[...] = jnp.zeros_like(diff_acc)

    # ---- gated activation  a = sigmoid(x @ w1 + b1) * x ------------------- #
    x = x_ref[...]                                               # (TN, Dp) f32
    # D is small here; at large D move this dot onto the MXU (x @ w1.T) so the
    # VPU/XLU only carry the sigmoid / gating.
    t = jnp.sum(x * w1_ref[...], axis=1, keepdims=True) + b1_ref[0, 0]   # (TN,1)
    gate = 1.0 / (1.0 + jnp.exp(-t))                             # exp on EUP
    a = gate * x                                                 # (TN, Dp)

    # ---- signed group-mean mask built in-kernel (no (G,N) matrices) ------- #
    gp = diff_acc.shape[0]
    tn = x.shape[0]
    rows = jax.lax.broadcasted_iota(jnp.int32, (gp, tn), 0)       # group row ids
    onehot = rows == gid_ref[...]                                 # (GP, TN)
    m = jnp.where(onehot, coef_ref[...], 0.0)                     # ±1/count or 0
    # One MXU matmul accumulates res1 - res0 directly (m0/m1 fused by sign).
    # On v6e/v7x: m.astype(bf16) / a.astype(bf16) here for 2x MXU density.
    diff_acc[...] += jnp.dot(m, a, preferred_element_type=jnp.float32)

    # ---- finalize on the last N-tile: linear2 + softmax + CE -------------- #
    @pl.when(i == pl.num_programs(0) - 1)
    def _():
        diff = diff_acc[...]                                      # (GP, Dp)
        logits = jnp.dot(diff, w2_ref[...],
                         preferred_element_type=jnp.float32) + b2_ref[...]
        col = jax.lax.broadcasted_iota(jnp.int32, logits.shape, 1)
        valid = col < n_classes
        neg = jnp.float32(-1e30)          # not -inf: 0 * inf would give NaN
        logits = jnp.where(valid, logits, neg)

        # prediction_diff = softmax(logits).  This runs ONCE on a single tiny
        # (8,128) tile, so exact divides are free; pl.reciprocal(approx=True)
        # is available if exact fp32 parity were not required.
        mx = jnp.max(logits, axis=1, keepdims=True)
        e = jnp.exp(logits - mx)
        p = e / jnp.sum(e, axis=1, keepdims=True)

        # CrossEntropyLoss applied to the already-softmaxed p (torch parity).
        z = jnp.where(valid, p, neg)
        mz = jnp.max(z, axis=1, keepdims=True)
        s = z - mz
        logp = s - jnp.log(jnp.sum(jnp.exp(s), axis=1, keepdims=True))

        per_row = -jnp.sum(ybar_ref[...] * logp, axis=1, keepdims=True)  # (GP,1)
        # padded group rows have all-zero y_bar -> contribute exactly 0
        loss_ref[...] = jnp.sum(per_row, axis=0, keepdims=True) * (1.0 / n_groups)


def contrast_loss_pallas(x, w1, b1, w2, b2, gid, coef, y_bar, *, tile_n=128):
    """Scalar contrast-probing loss.

    x:(N,D)  w1:(1,D)  b1:(1,1)  w2:(D,C) (= linear2.weight.T)  b2:(1,C)
    gid:(N,) int32   coef:(N,) f32   y_bar:(G,C) f32  (precomputed host-side)

    tile_n: N-tile.  128 is plenty at demo shapes; at real N raise it (512–2048)
    so each DMA is large, keeping 2 (double-buffer) * tile_n*(D_pad*4 + 8) bytes
    plus the resident w2 / accumulator under the scoped VMEM limit (32 MiB set
    below; remember v7x only has 64 MiB physical VMEM per core).
    """
    if tile_n % 128 != 0:
        raise ValueError("tile_n must be a multiple of 128 (lane width)")
    n, d = x.shape
    c = w2.shape[1]
    g = y_bar.shape[0]

    dp = _round_up(d, 128)            # lane-dense feature dim
    cp = _round_up(c, 128)            # lane-dense class dim
    gp = _round_up(g, 8)              # sublane-aligned group dim
    n_pad = _round_up(n, tile_n)
    steps = n_pad // tile_n

    f32 = jnp.float32
    xp = jnp.pad(x.astype(f32), ((0, n_pad - n), (0, dp - d)))
    w1p = jnp.pad(w1.astype(f32).reshape(1, d), ((0, 0), (0, dp - d)))
    b1p = b1.astype(f32).reshape(1, 1)
    w2p = jnp.pad(w2.astype(f32), ((0, dp - d), (0, cp - c)))
    b2p = jnp.pad(b2.astype(f32).reshape(1, c), ((0, 0), (0, cp - c)))
    gidp = jnp.pad(gid.astype(jnp.int32).reshape(1, n), ((0, 0), (0, n_pad - n)))
    # padded samples get coef = 0 -> never contribute to any group mean
    coefp = jnp.pad(coef.astype(f32).reshape(1, n), ((0, 0), (0, n_pad - n)))
    ybarp = jnp.pad(y_bar.astype(f32), ((0, gp - g), (0, cp - c)))

    kernel = functools.partial(_contrast_kernel, n_classes=c, n_groups=g)

    grid_spec = pltpu.PrefetchScalarGridSpec(
        num_scalar_prefetch=0,
        grid=(steps,),
        in_specs=[
            pl.BlockSpec((tile_n, dp), lambda i: (i, 0)),       # x tile (streamed)
            pl.BlockSpec((1, tile_n), lambda i: (0, i)),        # group ids tile
            pl.BlockSpec((1, tile_n), lambda i: (0, i)),        # ±1/count tile
            pl.BlockSpec((1, dp), lambda i: (0, 0)),            # w1 (VMEM-resident)
            pl.BlockSpec(memory_space=pltpu.MemorySpace.SMEM),  # b1 scalar in SMEM
            pl.BlockSpec((dp, cp), lambda i: (0, 0)),           # w2 (resident)
            pl.BlockSpec((1, cp), lambda i: (0, 0)),            # b2 (resident)
            pl.BlockSpec((gp, cp), lambda i: (0, 0)),           # y_bar (resident)
        ],
        out_specs=pl.BlockSpec((1, 1), lambda i: (0, 0)),
        scratch_shapes=[pltpu.VMEM((gp, dp), jnp.float32)],      # diff accumulator
    )

    out = pl.pallas_call(
        kernel,
        grid_spec=grid_spec,
        out_shape=jax.ShapeDtypeStruct((1, 1), jnp.float32),
        compiler_params=pltpu.CompilerParams(
            dimension_semantics=("arbitrary",),   # serial N reduction
            vmem_limit_bytes=32 * 1024 * 1024,
        ),
    )(xp, gidp, coefp, w1p, b1p, w2p, b2p, ybarp)
    # TODO(synk): on v7x (2 TensorCores) split the N reduction onto a leading
    # "parallel" grid axis with per-core partial (G,D) accumulator outputs and a
    # tiny combine/finalize step; a single scalar-loss kernel cannot span cores.
    return out[0, 0]


# ------------------------- host-side glue (labels) ------------------------- #

def prepare_contrast_inputs(labels, labels2, y):
    """Fold the torch unique()/mask/scatter_add_ bookkeeping into compact arrays.

    Returns
      gid  : (N,) int32 — index of each sample's `labels` value in the shared
                          sorted unique group list.
      coef : (N,) f64   — sign / count(group, subgroup); sign = -1 for the first
                          unique labels2 value (ress[0]) and +1 for the second
                          (ress[1]), so   diff[g] = sum_j coef_j * a_j.
      y_bar: (G, C) f64 — torch's y_ from the LAST subgroup iteration, whose
                          scatter_add_ consumes the FIRST n_sub rows of full y.
    """
    labels = np.asarray(labels)
    labels2 = np.asarray(labels2)
    y = np.asarray(y, dtype=np.float64)
    n = labels.shape[0]

    uniq2 = np.unique(labels2)
    if len(uniq2) != 2:
        raise ValueError('label2 should have exactly two unique values')

    gid = np.zeros(n, dtype=np.int32)
    coef = np.zeros(n, dtype=np.float64)
    uniques, y_bar = [], None
    for s, val in enumerate(uniq2):
        mask = labels2 == val
        idx = np.nonzero(mask)[0]
        uniq, inv = np.unique(labels[mask], return_inverse=True)
        uniques.append(uniq)
        counts = np.bincount(inv, minlength=uniq.shape[0]).astype(np.float64)
        sign = 1.0 if s == 1 else -1.0
        gid[idx] = inv.astype(np.int32)
        coef[idx] = sign / counts[inv]
        # torch quirk: scatter_add_ uses the FIRST len(idx) rows of the full y,
        # and only the LAST subgroup's y_ survives the loop.
        yb = np.zeros((uniq.shape[0], y.shape[1]), dtype=np.float64)
        np.add.at(yb, inv, y[: idx.shape[0]])
        y_bar = yb / counts[:, None]
    if not np.array_equal(uniques[0], uniques[1]):
        raise ValueError('not match')
    return gid, coef, y_bar


def reference_loss_f64(x, w1, b1, w2, b2, labels, labels2, y):
    """float64 numpy re-implementation of ContrastLinearProbing.forward."""
    x = np.asarray(x, dtype=np.float64)
    w1 = np.asarray(w1, dtype=np.float64)
    b1 = np.asarray(b1, dtype=np.float64)
    w2 = np.asarray(w2, dtype=np.float64)
    b2 = np.asarray(b2, dtype=np.float64)
    y = np.asarray(y, dtype=np.float64)
    labels = np.asarray(labels)
    labels2 = np.asarray(labels2)

    a = (1.0 / (1.0 + np.exp(-(x @ w1.T + b1)))) * x
    uniq2 = np.unique(labels2)
    ress, uniques, y_bar = [], [], None
    for val in uniq2:
        mask = labels2 == val
        uniq, inv = np.unique(labels[mask], return_inverse=True)
        uniques.append(uniq)
        counts = np.bincount(inv, minlength=uniq.shape[0]).astype(np.float64)
        res = np.zeros((uniq.shape[0], x.shape[1]))
        np.add.at(res, inv, a[mask])
        ress.append(res / counts[:, None])
        yb = np.zeros((uniq.shape[0], y.shape[1]))
        np.add.at(yb, inv, y[: int(mask.sum())])
        y_bar = yb / counts[:, None]
    assert np.array_equal(uniques[0], uniques[1])

    logits = (ress[1] - ress[0]) @ w2 + b2
    logits = logits - logits.max(axis=1, keepdims=True)
    p = np.exp(logits) / np.exp(logits).sum(axis=1, keepdims=True)
    z = p - p.max(axis=1, keepdims=True)
    logp = z - np.log(np.exp(z).sum(axis=1, keepdims=True))
    return float(np.mean(-np.sum(y_bar * logp, axis=1)))


# --------------------------------- main ------------------------------------ #

if __name__ == "__main__":
    key = jax.random.PRNGKey(0)
    N, D, C, G = 512, 16, 8, 4     # batch, input_dim, y_dim, #cell-type groups
    HIDDEN = 32                    # hidden_dim: unused by the module, kept for parity
    TILE_N = 128                   # -> 4 grid steps; raise to 512-2048 at real N

    k_x, k_w1, k_b1, k_w2, k_b2, k_y = jax.random.split(key, 6)
    x = jax.random.normal(k_x, (N, D), dtype=jnp.float32)
    labels = np.tile(np.arange(G), N // G)        # cell-type groups
    labels2 = np.repeat(np.arange(2), N // 2)     # exactly two contrast subgroups
    y_cls = np.asarray(jax.random.randint(k_y, (N,), 0, C))
    y = np.eye(C, dtype=np.float32)[y_cls]        # one-hot targets

    # nn.Linear(D, 1) and nn.Linear(D, C) parameters (w2 stored as (D, C) = weight.T)
    w1 = jax.random.normal(k_w1, (1, D), dtype=jnp.float32) * 0.1
    b1 = jax.random.normal(k_b1, (1, 1), dtype=jnp.float32) * 0.1
    w2 = jax.random.normal(k_w2, (D, C), dtype=jnp.float32) * 0.1
    b2 = jax.random.normal(k_b2, (1, C), dtype=jnp.float32) * 0.1

    # host-side: fold unique()/scatter_add_ bookkeeping, hoist y_bar out of kernel
    gid, coef, y_bar = prepare_contrast_inputs(labels, labels2, y)

    loss = contrast_loss_pallas(
        x, w1, b1, w2, b2,
        jnp.asarray(gid), jnp.asarray(coef, dtype=jnp.float32),
        jnp.asarray(y_bar, dtype=jnp.float32), tile_n=TILE_N)
    loss = jax.block_until_ready(loss)

    ref = reference_loss_f64(x, w1, b1, w2, b2, labels, labels2, y)
    np.testing.assert_allclose(float(loss), ref, rtol=1e-4, atol=1e-5)
    print("KERNEL_OK")
</pallas_src>

<mosaic_0001>
module attributes {stable_mosaic.version = 11 : i64} {
  func.func @_contrast_kernel(%arg0: i32, %arg1: memref<128x128xf32, #tpu.memory_space<vmem>>, %arg2: memref<1x128xi32, #tpu.memory_space<vmem>>, %arg3: memref<1x128xf32, #tpu.memory_space<vmem>>, %arg4: memref<1x128xf32, #tpu.memory_space<vmem>>, %arg5: memref<1x1xf32, #tpu.memory_space<smem>>, %arg6: memref<128x128xf32, #tpu.memory_space<vmem>>, %arg7: memref<1x128xf32, #tpu.memory_space<vmem>>, %arg8: memref<8x128xf32, #tpu.memory_space<vmem>>, %arg9: memref<1x1xf32, #tpu.memory_space<vmem>>, %arg10: memref<8x128xf32, #tpu.memory_space<vmem>>) attributes {dimension_semantics = [#tpu.dimension_semantics<arbitrary>], iteration_bounds = array<i64: 4>, scalar_prefetch = 0 : i64, scratch_operands = 1 : i64, tpu.core_type = #tpu.core_type<tc>, window_params = [{transform_indices = @transform_0, window_bounds = array<i64: 128, 128>}, {transform_indices = @transform_1, window_bounds = array<i64: 1, 128>}, {transform_indices = @transform_2, window_bounds = array<i64: 1, 128>}, {pipeline_mode = #tpu.pipeline_mode<synchronous>, transform_indices = @transform_3, window_bounds = array<i64: 1, 128>}, {transform_indices = @transform_4, window_bounds = array<i64: 1, 1>}, {pipeline_mode = #tpu.pipeline_mode<synchronous>, transform_indices = @transform_5, window_bounds = array<i64: 128, 128>}, {pipeline_mode = #tpu.pipeline_mode<synchronous>, transform_indices = @transform_6, window_bounds = array<i64: 1, 128>}, {pipeline_mode = #tpu.pipeline_mode<synchronous>, transform_indices = @transform_7, window_bounds = array<i64: 8, 128>}, {pipeline_mode = #tpu.pipeline_mode<synchronous>, transform_indices = @transform_8, window_bounds = array<i64: 1, 1>}]} {
    %c0_i32 = arith.constant 0 : i32
    %0 = arith.cmpi eq, %arg0, %c0_i32 : i32
    %1 = arith.extui %0 : i1 to i32
    %c0_i32_0 = arith.constant 0 : i32
    %2 = arith.cmpi ne, %1, %c0_i32_0 : i32
    scf.if %2 {
      %cst_20 = arith.constant 0.000000e+00 : f32
      %37 = vector.broadcast %cst_20 : f32 to vector<8x128xf32>
      %c0_21 = arith.constant 0 : index
      %c0_22 = arith.constant 0 : index
      %38 = vector.load %arg10[%c0_21, %c0_22] : memref<8x128xf32, #tpu.memory_space<vmem>>, vector<8x128xf32>
      tpu.vector_store %arg10[%c0_21, %c0_22], %37 {strides = array<i32>} : memref<8x128xf32, #tpu.memory_space<vmem>>, vector<8x128xf32>,
    } else {
    }
    %c0 = arith.constant 0 : index
    %c0_1 = arith.constant 0 : index
    %3 = vector.load %arg1[%c0, %c0_1] : memref<128x128xf32, #tpu.memory_space<vmem>>, vector<128x128xf32>
    %c0_2 = arith.constant 0 : index
    %c0_3 = arith.constant 0 : index
    %4 = vector.load %arg4[%c0_2, %c0_3] : memref<1x128xf32, #tpu.memory_space<vmem>>, vector<1x128xf32>
    %5 = vector.broadcast %4 : vector<1x128xf32> to vector<128x128xf32>
    %6 = arith.mulf %3, %5 : vector<128x128xf32>
    %cst = arith.constant dense<0.000000e+00> : vector<128xf32>
    %7 = vector.multi_reduction <add>, %6, %cst [1] : vector<128x128xf32> to vector<128xf32>
    %8 = vector.shape_cast %7 : vector<128xf32> to vector<128x1xf32>
    %c0_4 = arith.constant 0 : index
    %c0_5 = arith.constant 0 : index
    %9 = memref.load %arg5[%c0_4, %c0_5] : memref<1x1xf32, #tpu.memory_space<smem>>
    %10 = vector.broadcast %9 : f32 to vector<128x1xf32>
    %11 = arith.addf %8, %10 : vector<128x1xf32>
    %cst_6 = arith.constant 0.000000e+00 : f32
    %12 = vector.broadcast %cst_6 : f32 to vector<128x1xf32>
    %13 = arith.subf %12, %11 : vector<128x1xf32>
    %14 = math.exp %13 : vector<128x1xf32>
    %cst_7 = arith.constant 1.000000e+00 : f32
    %15 = vector.broadcast %cst_7 : f32 to vector<128x1xf32>
    %16 = arith.addf %15, %14 : vector<128x1xf32>
    %cst_8 = arith.constant 1.000000e+00 : f32
    %17 = vector.broadcast %cst_8 : f32 to vector<128x1xf32>
    %18 = arith.divf %17, %16 : vector<128x1xf32>
    %19 = vector.broadcast %18 : vector<128x1xf32> to vector<128x128xf32>
    %20 = arith.mulf %19, %3 : vector<128x128xf32>
    %21 = tpu.iota {dimensions = array<i32: 0>} : vector<8x128xi32>
    %c0_9 = arith.constant 0 : index
    %c0_10 = arith.constant 0 : index
    %22 = vector.load %arg2[%c0_9, %c0_10] : memref<1x128xi32, #tpu.memory_space<vmem>>, vector<1x128xi32>
    %23 = vector.broadcast %22 : vector<1x128xi32> to vector<8x128xi32>
    %24 = arith.cmpi eq, %21, %23 : vector<8x128xi32>
    %c0_11 = arith.constant 0 : index
    %c0_12 = arith.constant 0 : index
    %25 = vector.load %arg3[%c0_11, %c0_12] : memref<1x128xf32, #tpu.memory_space<vmem>>, vector<1x128xf32>
    %cst_13 = arith.constant 0.000000e+00 : f32
    %26 = vector.shape_cast %25 : vector<1x128xf32> to vector<1x128xf32>
    %27 = vector.broadcast %26 : vector<1x128xf32> to vector<8x128xf32>
    %28 = vector.broadcast %cst_13 : f32 to vector<8x128xf32>
    %29 = arith.select %24, %27, %28 : vector<8x128xi1>, vector<8x128xf32>
    %c0_14 = arith.constant 0 : index
    %c0_15 = arith.constant 0 : index
    %30 = vector.load %arg10[%c0_14, %c0_15] : memref<8x128xf32, #tpu.memory_space<vmem>>, vector<8x128xf32>
    %cst_16 = arith.constant dense<0.000000e+00> : vector<8x128xf32>
    %31 = tpu.matmul %29, %20, %cst_16 {dimension_numbers = #tpu.dot_dimension_numbers<[1], [0], [0], [1], [0, 0, 1, 1], [], []>} : vector<8x128xf32>, vector<128x128xf32>, vector<8x128xf32> -> vector<8x128xf32>
    %32 = arith.addf %30, %31 : vector<8x128xf32>
    %c0_17 = arith.constant 0 : index
    %c0_18 = arith.constant 0 : index
    %33 = vector.load %arg10[%c0_17, %c0_18] : memref<8x128xf32, #tpu.memory_space<vmem>>, vector<8x128xf32>
    tpu.vector_store %arg10[%c0_17, %c0_18], %32 {strides = array<i32>} : memref<8x128xf32, #tpu.memory_space<vmem>>, vector<8x128xf32>,
    %c3_i32 = arith.constant 3 : i32
    %34 = arith.cmpi eq, %arg0, %c3_i32 : i32
    %35 = arith.extui %34 : i1 to i32
    %c0_i32_19 = arith.constant 0 : i32
    %36 = arith.cmpi ne, %35, %c0_i32_19 : i32
    scf.if %36 {
      %c0_20 = arith.constant 0 : index
      %c0_21 = arith.constant 0 : index
      %37 = vector.load %arg10[%c0_20, %c0_21] : memref<8x128xf32, #tpu.memory_space<vmem>>, vector<8x128xf32>
      %c0_22 = arith.constant 0 : index
      %c0_23 = arith.constant 0 : index
      %38 = vector.load %arg6[%c0_22, %c0_23] : memref<128x128xf32, #tpu.memory_space<vmem>>, vector<128x128xf32>
      %cst_24 = arith.constant dense<0.000000e+00> : vector<8x128xf32>
      %39 = tpu.matmul %37, %38, %cst_24 {dimension_numbers = #tpu.dot_dimension_numbers<[1], [0], [0], [1], [0, 0, 1, 1], [], []>} : vector<8x128xf32>, vector<128x128xf32>, vector<8x128xf32> -> vector<8x128xf32>
      %c0_25 = arith.constant 0 : index
      %c0_26 = arith.constant 0 : index
      %40 = vector.load %arg7[%c0_25, %c0_26] : memref<1x128xf32, #tpu.memory_space<vmem>>, vector<1x128xf32>
      %41 = vector.broadcast %40 : vector<1x128xf32> to vector<8x128xf32>
      %42 = arith.addf %39, %41 : vector<8x128xf32>
      %43 = tpu.iota {dimensions = array<i32: 1>} : vector<8x128xi32>
      %c8_i32 = arith.constant 8 : i32
      %44 = vector.broadcast %c8_i32 : i32 to vector<8x128xi32>
      %45 = arith.cmpi slt, %43, %44 : vector<8x128xi32>
      %cst_27 = arith.constant -1.000000e+30 : f32
      %46 = vector.broadcast %cst_27 : f32 to vector<8x128xf32>
      %47 = arith.select %45, %42, %46 : vector<8x128xi1>, vector<8x128xf32>
      %cst_28 = arith.constant dense<0xFF800000> : vector<8xf32>
      %48 = vector.multi_reduction <maximumf>, %47, %cst_28 [1] : vector<8x128xf32> to vector<8xf32>
      %49 = vector.shape_cast %48 : vector<8xf32> to vector<8x1xf32>
      %50 = vector.broadcast %49 : vector<8x1xf32> to vector<8x128xf32>
      %51 = arith.subf %47, %50 : vector<8x128xf32>
      %52 = math.exp %51 : vector<8x128xf32>
      %cst_29 = arith.constant dense<0.000000e+00> : vector<8xf32>
      %53 = vector.multi_reduction <add>, %52, %cst_29 [1] : vector<8x128xf32> to vector<8xf32>
      %54 = vector.shape_cast %53 : vector<8xf32> to vector<8x1xf32>
      %55 = vector.broadcast %54 : vector<8x1xf32> to vector<8x128xf32>
      %56 = arith.divf %52, %55 : vector<8x128xf32>
      %cst_30 = arith.constant -1.000000e+30 : f32
      %57 = vector.broadcast %cst_30 : f32 to vector<8x128xf32>
      %58 = arith.select %45, %56, %57 : vector<8x128xi1>, vector<8x128xf32>
      %cst_31 = arith.constant dense<0xFF800000> : vector<8xf32>
      %59 = vector.multi_reduction <maximumf>, %58, %cst_31 [1] : vector<8x128xf32> to vector<8xf32>
      %60 = vector.shape_cast %59 : vector<8xf32> to vector<8x1xf32>
      %61 = vector.broadcast %60 : vector<8x1xf32> to vector<8x128xf32>
      %62 = arith.subf %58, %61 : vector<8x128xf32>
      %63 = math.exp %62 : vector<8x128xf32>
      %cst_32 = arith.constant dense<0.000000e+00> : vector<8xf32>
      %64 = vector.multi_reduction <add>, %63, %cst_32 [1] : vector<8x128xf32> to vector<8xf32>
      %65 = vector.shape_cast %64 : vector<8xf32> to vector<8x1xf32>
      %66 = math.log %65 : vector<8x1xf32>
      %67 = vector.broadcast %66 : vector<8x1xf32> to vector<8x128xf32>
      %68 = arith.subf %62, %67 : vector<8x128xf32>
      %c0_33 = arith.constant 0 : index
      %c0_34 = arith.constant 0 : index
      %69 = vector.load %arg8[%c0_33, %c0_34] : memref<8x128xf32, #tpu.memory_space<vmem>>, vector<8x128xf32>
      %70 = arith.mulf %69, %68 : vector<8x128xf32>
      %cst_35 = arith.constant dense<0.000000e+00> : vector<8xf32>
      %71 = vector.multi_reduction <add>, %70, %cst_35 [1] : vector<8x128xf32> to vector<8xf32>
      %72 = vector.shape_cast %71 : vector<8xf32> to vector<8x1xf32>
      %cst_36 = arith.constant 0.000000e+00 : f32
      %73 = vector.broadcast %cst_36 : f32 to vector<8x1xf32>
      %74 = arith.subf %73, %72 : vector<8x1xf32>
      %cst_37 = arith.constant dense<0.000000e+00> : vector<1xf32>
      %75 = vector.multi_reduction <add>, %74, %cst_37 [0] : vector<8x1xf32> to vector<1xf32>
      %76 = vector.shape_cast %75 : vector<1xf32> to vector<1x1xf32>
      %cst_38 = arith.constant 2.500000e-01 : f32
      %77 = vector.broadcast %cst_38 : f32 to vector<1x1xf32>
      %78 = arith.mulf %76, %77 : vector<1x1xf32>
      %c0_39 = arith.constant 0 : index
      %c0_40 = arith.constant 0 : index
      %79 = vector.load %arg9[%c0_39, %c0_40] : memref<1x1xf32, #tpu.memory_space<vmem>>, vector<1x1xf32>
      tpu.vector_store %arg9[%c0_39, %c0_40], %78 {strides = array<i32>} : memref<1x1xf32, #tpu.memory_space<vmem>>, vector<1x1xf32>,
    } else {
    }
    return
  }
  func.func @transform_0(%arg0: i32) -> (i32, i32) {
    %c0_i32 = arith.constant 0 : i32
    %c0_i32_0 = arith.constant 0 : i32
    return %arg0, %c0_i32 : i32, i32
  }
  func.func @transform_1(%arg0: i32) -> (i32, i32) {
    %c0_i32 = arith.constant 0 : i32
    %c0_i32_0 = arith.constant 0 : i32
    return %c0_i32, %arg0 : i32, i32
  }
  func.func @transform_2(%arg0: i32) -> (i32, i32) {
    %c0_i32 = arith.constant 0 : i32
    %c0_i32_0 = arith.constant 0 : i32
    return %c0_i32, %arg0 : i32, i32
  }
  func.func @transform_3(%arg0: i32) -> (i32, i32) {
    %c0_i32 = arith.constant 0 : i32
    %c0_i32_0 = arith.constant 0 : i32
    %c0_i32_1 = arith.constant 0 : i32
    return %c0_i32, %c0_i32_0 : i32, i32
  }
  func.func @transform_4(%arg0: i32) -> (i32, i32) {
    %c0_i32 = arith.constant 0 : i32
    %c0_i32_0 = arith.constant 0 : i32
    %c0_i32_1 = arith.constant 0 : i32
    return %c0_i32, %c0_i32_0 : i32, i32
  }
  func.func @transform_5(%arg0: i32) -> (i32, i32) {
    %c0_i32 = arith.constant 0 : i32
    %c0_i32_0 = arith.constant 0 : i32
    %c0_i32_1 = arith.constant 0 : i32
    return %c0_i32, %c0_i32_0 : i32, i32
  }
  func.func @transform_6(%arg0: i32) -> (i32, i32) {
    %c0_i32 = arith.constant 0 : i32
    %c0_i32_0 = arith.constant 0 : i32
    %c0_i32_1 = arith.constant 0 : i32
    return %c0_i32, %c0_i32_0 : i32, i32
  }
  func.func @transform_7(%arg0: i32) -> (i32, i32) {
    %c0_i32 = arith.constant 0 : i32
    %c0_i32_0 = arith.constant 0 : i32
    %c0_i32_1 = arith.constant 0 : i32
    return %c0_i32, %c0_i32_0 : i32, i32
  }
  func.func @transform_8(%arg0: i32) -> (i32, i32) {
    %c0_i32 = arith.constant 0 : i32
    %c0_i32_0 = arith.constant 0 : i32
    %c0_i32_1 = arith.constant 0 : i32
    return %c0_i32, %c0_i32_0 : i32, i32
  }
}

</mosaic_0001>

<llo_original>
// kernel: tpu_custom_call.1
$region0: #{tpu_custom_call.1}
  #allocation0 [shape = 'u32[]', space=smem, size = 0x4, offset = 0x4, fixed_abs, tag = 'smem constant byte address 0x4 - core index']
  #allocation1 [shape = 'u32[144,128]{1,0:T(1,128)}', space=vmem, size = 0x12000, scoped, tag = 'internal scratch']
  #allocation2 [shape = 'f32[8,128]{1,0:T(8,128)}', space=vmem, size = 0x1000, scoped, tag = 'scratch operand']
  #allocation3 [shape = 'f32[1,1]{1,0:T(1,128)S(6)}', space=smem, size = 0x200, scoped, tag = 'scoped memory for tpu_custom_call.1']
  %s0 = inlined_call_operand.hbm [shape: f32[512,128], index: 0, kind: input, shape index: {}]
  %s1 = inlined_call_operand.hbm [shape: s32[1,512], index: 1, kind: input, shape index: {}]
  %s2 = inlined_call_operand.vmem [shape: f32[1,512], index: 2, kind: input, shape index: {}]
  %s3 = inlined_call_operand.hbm [shape: f32[1,128], index: 3, kind: input, shape index: {}]
  %s4 = inlined_call_operand.<no memory space> [shape: f32[1,1], index: 4, kind: input, shape index: {}]
  %s5 = inlined_call_operand.hbm [shape: f32[128,128], index: 5, kind: input, shape index: {}]
  %s6 = inlined_call_operand.hbm [shape: f32[1,128], index: 6, kind: input, shape index: {}]
  %s7 = inlined_call_operand.vmem [shape: f32[8,128], index: 7, kind: input, shape index: {}]
  %s8 = inlined_call_operand.hbm [shape: f32[1,1], index: 8, kind: output, shape index: {}]
  %s9 = sld [smem:[#allocation0]]
  $region93: #{tpu_custom_call.1} parent=0
    _
  %s11 = ssub.s32 1, %s9
  %s12 = scalar_select 0, %s11, %s9
  %13 = sst [smem:[#allocation3]] %s4
  $region1: #{tpu_custom_call.1} parent=0
    #allocation4 [shape = 'u8[131072]{0}', space=vmem, size = 0x20000, scoped, tag = 'input window, operand 0']
    #allocation5 [shape = 's32[2]{0}', space=sflag, size = 0x8, scoped, tag = 'scoped memory for tpu_custom_call.1']
    #allocation6 [shape = 's32[2]{0}', space=sflag, size = 0x8, scoped, tag = 'scoped memory for tpu_custom_call.1']
    #allocation7 [shape = 'u8[1024]{0}', space=vmem, size = 0x400, scoped, tag = 'input window, operand 1']
    #allocation8 [shape = 's32[2]{0}', space=sflag, size = 0x8, scoped, tag = 'scoped memory for tpu_custom_call.1']
    #allocation9 [shape = 'u8[512]{0}', space=vmem, size = 0x400, scoped, tag = 'input window, operand 3, single buffered']
    #allocation10 [shape = 'u8[65536]{0}', space=vmem, size = 0x10000, scoped, tag = 'input window, operand 5, single buffered']
    #allocation11 [shape = 's32[1]{0}', space=sflag, size = 0x4, scoped, tag = 'scoped memory for tpu_custom_call.1']
    #allocation12 [shape = 'u8[512]{0}', space=vmem, size = 0x400, scoped, tag = 'input window, operand 6, single buffered']
    #allocation13 [shape = 'u8[512]{0}', space=vmem, size = 0x400, scoped, tag = 'output window, operand 0, single buffered']
    %14 = vsyncpa [#allocation5], 0
    %s15 = scalar_lea.sflag [#allocation5], 1
    %16 = vsyncpa %s15, 0
    %17 = vsyncpa [#allocation8], 0
    %s18 = scalar_lea.sflag [#allocation8], 1
    %19 = vsyncpa %s18, 0
    %20 = vsyncpa [#allocation11], 0
    %21 = vsyncpa [#allocation6], 0
    loop: start=0, step=1, limit=6
    $region2: #{tpu_custom_call.1} parent=1 // loop_pre_header
      _
    $region3: #{tpu_custom_call.1} parent=1 // loop_header
      %s23 = sphi 0, %s27
      %p24 = scmp.ge.s32.totalorder %s23, 6
      %s33 = sphi 0, %s35
      %s36 = sphi 0, %s33
      %s37 = sphi 0, %s36
      %s53 = sphi 0, %s37
      %s59 = sphi 0, %s61
      %s62 = sphi 0, %s59
      %s63 = sphi 0, %s62
      %s79 = sphi 0, %s63
      %s85 = sphi 0, %s87
      %s88 = sphi 0, %s85
      %s89 = sphi 0, %s88
      %s105 = sphi 0, %s89
      %s109 = sphi 0, %s109
      %s111 = sphi 0, %s109
      %s112 = sphi 0, %s111
      %s126 = sphi 0, %s112
      %s130 = sphi 0, %s130
      %s132 = sphi 0, %s130
      %s133 = sphi 0, %s132
      %s147 = sphi 0, %s133
      %s151 = sphi 0, %s151
      %s153 = sphi 0, %s151
      %s154 = sphi 0, %s153
      %s168 = sphi 0, %s154
      %s172 = sphi 0, %s172
      %s174 = sphi 0, %s172
      %s175 = sphi 0, %s174
      %s189 = sphi 0, %s175
      %s193 = sphi 0, %s193
      %s195 = sphi 0, %s193
      %s196 = sphi 0, %s195
      %s210 = sphi 0, %s196
      %s214 = sphi 0, %s214
      %s216 = sphi 0, %s214
      %s217 = sphi 0, %s216
      %s231 = sphi 0, %s217
    $region4: #{tpu_custom_call.1} parent=1 // loop_header_branch
      %26 = sbr.rel (%p24) target = $region8
    $region5: #{tpu_custom_call.1} parent=1 // loop_body
      %s28 = ssub.s32 %s23, 1
      %s29 = ssub.s32 %s23, 2
      %s30 = sadd.s32 %s23, 1
      %s31 = ssub.s32 %s23, %s30
      %p32 = scmp.eq.s32.totalorder %s31, 0
      %s34 = sadd.s32 %s33, 1
      %s35 = scalar_select %p32, %s33, %s34
      %p38 = pneg %p32
      %p39 = scmp.eq.s32.totalorder %s23, 3
      %p40 = por %p38, %p39
      %p41 = scmp.ne.s32.totalorder %s33, %s36
      %p42 = scmp.eq.s32.totalorder %s23, 0
      %p43 = por %p41, %p42
      %p44 = scmp.ne.s32.totalorder %s33, %s36
      %p45 = scmp.eq.s32.totalorder %s28, 3
      %p46 = por %p44, %p45
      %p47 = scmp.ne.s32.totalorder %s36, %s37
      %p48 = scmp.eq.s32.totalorder %s28, 0
      %p49 = por %p47, %p48
      %p50 = scmp.ne.s32.totalorder %s36, %s37
      %p51 = scmp.eq.s32.totalorder %s29, 3
      %p52 = por %p50, %p51
      %p54 = scmp.ne.s32.totalorder %s37, %s53
      %p55 = scmp.eq.s32.totalorder %s29, 0
      %p56 = por %p54, %p55
      %s57 = ssub.s32 %s23, %s30
      %p58 = scmp.eq.s32.totalorder %s57, 0
      %s60 = sadd.s32 %s59, 1
      %s61 = scalar_select %p58, %s59, %s60
      %p64 = pneg %p58
      %p65 = scmp.eq.s32.totalorder %s23, 3
      %p66 = por %p64, %p65
      %p67 = scmp.ne.s32.totalorder %s59, %s62
      %p68 = scmp.eq.s32.totalorder %s23, 0
      %p69 = por %p67, %p68
      %p70 = scmp.ne.s32.totalorder %s59, %s62
      %p71 = scmp.eq.s32.totalorder %s28, 3
      %p72 = por %p70, %p71
      %p73 = scmp.ne.s32.totalorder %s62, %s63
      %p74 = scmp.eq.s32.totalorder %s28, 0
      %p75 = por %p73, %p74
      %p76 = scmp.ne.s32.totalorder %s62, %s63
      %p77 = scmp.eq.s32.totalorder %s29, 3
      %p78 = por %p76, %p77
      %p80 = scmp.ne.s32.totalorder %s63, %s79
      %p81 = scmp.eq.s32.totalorder %s29, 0
      %p82 = por %p80, %p81
      %s83 = ssub.s32 %s23, %s30
      %p84 = scmp.eq.s32.totalorder %s83, 0
      %s86 = sadd.s32 %s85, 1
      %s87 = scalar_select %p84, %s85, %s86
      %p90 = pneg %p84
      %p91 = scmp.eq.s32.totalorder %s23, 3
      %p92 = por %p90, %p91
      %p93 = scmp.ne.s32.totalorder %s85, %s88
      %p94 = scmp.eq.s32.totalorder %s23, 0
      %p95 = por %p93, %p94
      %p96 = scmp.ne.s32.totalorder %s85, %s88
      %p97 = scmp.eq.s32.totalorder %s28, 3
      %p98 = por %p96, %p97
      %p99 = scmp.ne.s32.totalorder %s88, %s89
      %p100 = scmp.eq.s32.totalorder %s28, 0
      %p101 = por %p99, %p100
      %p102 = scmp.ne.s32.totalorder %s88, %s89
      %p103 = scmp.eq.s32.totalorder %s29, 3
      %p104 = por %p102, %p103
      %p106 = scmp.ne.s32.totalorder %s89, %s105
      %p107 = scmp.eq.s32.totalorder %s29, 0
      %p108 = por %p106, %p107
      %s110 = sadd.s32 %s109, 1
      %p113 = scmp.eq.s32.totalorder %s23, 3
      %p114 = scmp.ne.s32.totalorder %s109, %s111
      %p115 = scmp.eq.s32.totalorder %s23, 0
      %p116 = por %p114, %p115
      %p117 = scmp.ne.s32.totalorder %s109, %s111
      %p118 = scmp.eq.s32.totalorder %s28, 3
      %p119 = por %p117, %p118
      %p120 = scmp.ne.s32.totalorder %s111, %s112
      %p121 = scmp.eq.s32.totalorder %s28, 0
      %p122 = por %p120, %p121
      %p123 = scmp.ne.s32.totalorder %s111, %s112
      %p124 = scmp.eq.s32.totalorder %s29, 3
      %p125 = por %p123, %p124
      %p127 = scmp.ne.s32.totalorder %s112, %s126
      %p128 = scmp.eq.s32.totalorder %s29, 0
      %p129 = por %p127, %p128
      %s131 = sadd.s32 %s130, 1
      %p134 = scmp.eq.s32.totalorder %s23, 3
      %p135 = scmp.ne.s32.totalorder %s130, %s132
      %p136 = scmp.eq.s32.totalorder %s23, 0
      %p137 = por %p135, %p136
      %p138 = scmp.ne.s32.totalorder %s130, %s132
      %p139 = scmp.eq.s32.totalorder %s28, 3
      %p140 = por %p138, %p139
      %p141 = scmp.ne.s32.totalorder %s132, %s133
      %p142 = scmp.eq.s32.totalorder %s28, 0
      %p143 = por %p141, %p142
      %p144 = scmp.ne.s32.totalorder %s132, %s133
      %p145 = scmp.eq.s32.totalorder %s29, 3
      %p146 = por %p144, %p145
      %p148 = scmp.ne.s32.totalorder %s133, %s147
      %p149 = scmp.eq.s32.totalorder %s29, 0
      %p150 = por %p148, %p149
      %s152 = sadd.s32 %s151, 1
      %p155 = scmp.eq.s32.totalorder %s23, 3
      %p156 = scmp.ne.s32.totalorder %s151, %s153
      %p157 = scmp.eq.s32.totalorder %s23, 0
      %p158 = por %p156, %p157
      %p159 = scmp.ne.s32.totalorder %s151, %s153
      %p160 = scmp.eq.s32.totalorder %s28, 3
      %p161 = por %p159, %p160
      %p162 = scmp.ne.s32.totalorder %s153, %s154
      %p163 = scmp.eq.s32.totalorder %s28, 0
      %p164 = por %p162, %p163
      %p165 = scmp.ne.s32.totalorder %s153, %s154
      %p166 = scmp.eq.s32.totalorder %s29, 3
      %p167 = por %p165, %p166
      %p169 = scmp.ne.s32.totalorder %s154, %s168
      %p170 = scmp.eq.s32.totalorder %s29, 0
      %p171 = por %p169, %p170
      %s173 = sadd.s32 %s172, 1
      %p176 = scmp.eq.s32.totalorder %s23, 3
      %p177 = scmp.ne.s32.totalorder %s172, %s174
      %p178 = scmp.eq.s32.totalorder %s23, 0
      %p179 = por %p177, %p178
      %p180 = scmp.ne.s32.totalorder %s172, %s174
      %p181 = scmp.eq.s32.totalorder %s28, 3
      %p182 = por %p180, %p181
      %p183 = scmp.ne.s32.totalorder %s174, %s175
      %p184 = scmp.eq.s32.totalorder %s28, 0
      %p185 = por %p183, %p184
      %p186 = scmp.ne.s32.totalorder %s174, %s175
      %p187 = scmp.eq.s32.totalorder %s29, 3
      %p188 = por %p186, %p187
      %p190 = scmp.ne.s32.totalorder %s175, %s189
      %p191 = scmp.eq.s32.totalorder %s29, 0
      %p192 = por %p190, %p191
      %s194 = sadd.s32 %s193, 1
      %p197 = scmp.eq.s32.totalorder %s23, 3
      %p198 = scmp.ne.s32.totalorder %s193, %s195
      %p199 = scmp.eq.s32.totalorder %s23, 0
      %p200 = por %p198, %p199
      %p201 = scmp.ne.s32.totalorder %s193, %s195
      %p202 = scmp.eq.s32.totalorder %s28, 3
      %p203 = por %p201, %p202
      %p204 = scmp.ne.s32.totalorder %s195, %s196
      %p205 = scmp.eq.s32.totalorder %s28, 0
      %p206 = por %p204, %p205
      %p207 = scmp.ne.s32.totalorder %s195, %s196
      %p208 = scmp.eq.s32.totalorder %s29, 3
      %p209 = por %p207, %p208
      %p211 = scmp.ne.s32.totalorder %s196, %s210
      %p212 = scmp.eq.s32.totalorder %s29, 0
      %p213 = por %p211, %p212
      %s215 = sadd.s32 %s214, 1
      %p218 = scmp.eq.s32.totalorder %s23, 3
      %p219 = scmp.ne.s32.totalorder %s214, %s216
      %p220 = scmp.eq.s32.totalorder %s23, 0
      %p221 = por %p219, %p220
      %p222 = scmp.ne.s32.totalorder %s214, %s216
      %p223 = scmp.eq.s32.totalorder %s28, 3
      %p224 = por %p222, %p223
      %p225 = scmp.ne.s32.totalorder %s216, %s217
      %p226 = scmp.eq.s32.totalorder %s28, 0
      %p227 = por %p225, %p226
      %p228 = scmp.ne.s32.totalorder %s216, %s217
      %p229 = scmp.eq.s32.totalorder %s29, 3
      %p230 = por %p228, %p229
      %p232 = scmp.ne.s32.totalorder %s217, %s231
      %p233 = scmp.eq.s32.totalorder %s29, 0
      %p234 = por %p232, %p233
      %p235 = scmp.le.s32.totalorder 1, %s23
      %p236 = scmp.lt.s32.totalorder %s23, 5
      %p237 = pnand %p235, %p236
      %p238 = pneg %p237
      // Predicated region
      $region9: #{tpu_custom_call.1} parent=5 // pred_check
        _
      $region10: #{tpu_custom_call.1} parent=5 // pred_check_branch
        %240 = sbr.rel (%p237) target = $region12
      $region11: #{tpu_custom_call.1} parent=5 // pred_region
        %s241 = ssub.s32 %s23, 1
        // Predicated region
        $region13: #{tpu_custom_call.1} parent=11 // pred_check
          %p242 = pneg %p122
        $region14: #{tpu_custom_call.1} parent=11 // pred_check_branch
          %244 = sbr.rel (%p242) target = $region16
        $region15: #{tpu_custom_call.1} parent=11 // pred_region
          %s246 = ssub.s32 16, 16
          %247 = vsyncadd [#allocation8], %s246
          %s249 = sshll.u32 [#allocation9], 4
          %s250 = int_to_ptr.vmem [resolvable:$true] %s249
          %252 = dma.hbm_to_vmem [thread:$0]  %s3, 16, %s250, [#allocation8]
        $region16: #{tpu_custom_call.1} parent=11 // pred_fallthru
          _
        // Predicated region
        $region17: #{tpu_custom_call.1} parent=11 // pred_check
          %p253 = pneg %p143
        $region18: #{tpu_custom_call.1} parent=11 // pred_check_branch
          %255 = sbr.rel (%p253) target = $region20
        $region19: #{tpu_custom_call.1} parent=11 // pred_region
          _
        $region20: #{tpu_custom_call.1} parent=11 // pred_fallthru
          _
        // Predicated region
        $region21: #{tpu_custom_call.1} parent=11 // pred_check
          %p256 = pneg %p164
        $region22: #{tpu_custom_call.1} parent=11 // pred_check_branch
          %258 = sbr.rel (%p256) target = $region24
        $region23: #{tpu_custom_call.1} parent=11 // pred_region
          %s260 = ssub.s32 2048, 2048
          %261 = vsyncadd [#allocation11], %s260
          %s262 = sshll.u32 [#allocation10], 4
          %s263 = int_to_ptr.vmem [resolvable:$true] %s262
          %268 = dma.hbm_to_vmem [thread:$0]  %s5, 2048, %s263, [#allocation11], 128, 128, 8
        $region24: #{tpu_custom_call.1} parent=11 // pred_fallthru
          _
        // Predicated region
        $region25: #{tpu_custom_call.1} parent=11 // pred_check
          %p269 = pneg %p185
        $region26: #{tpu_custom_call.1} parent=11 // pred_check_branch
          %271 = sbr.rel (%p269) target = $region28
        $region27: #{tpu_custom_call.1} parent=11 // pred_region
          %s273 = ssub.s32 16, 16
          %274 = vsyncadd [#allocation11], %s273
          %s276 = sshll.u32 [#allocation12], 4
          %s277 = int_to_ptr.vmem [resolvable:$true] %s276
          %279 = dma.hbm_to_vmem [thread:$0]  %s6, 16, %s277, [#allocation11]
        $region28: #{tpu_custom_call.1} parent=11 // pred_fallthru
          _
        // Predicated region
        $region29: #{tpu_custom_call.1} parent=11 // pred_check
          %p280 = pneg %p206
        $region30: #{tpu_custom_call.1} parent=11 // pred_check_branch
          %282 = sbr.rel (%p280) target = $region32
        $region31: #{tpu_custom_call.1} parent=11 // pred_region
          _
        $region32: #{tpu_custom_call.1} parent=11 // pred_fallthru
          _
      $region12: #{tpu_custom_call.1} parent=5 // pred_fallthru
        _
      %p283 = scmp.lt.s32.totalorder %s23, 4
      // Predicated region
      $region33: #{tpu_custom_call.1} parent=5 // pred_check
        %p284 = pneg %p283
      $region34: #{tpu_custom_call.1} parent=5 // pred_check_branch
        %286 = sbr.rel (%p284) target = $region36
      $region35: #{tpu_custom_call.1} parent=5 // pred_region
        // Predicated region
        $region37: #{tpu_custom_call.1} parent=35 // pred_check
          %p287 = pneg %p43
        $region38: #{tpu_custom_call.1} parent=35 // pred_check_branch
          %289 = sbr.rel (%p287) target = $region40
        $region39: #{tpu_custom_call.1} parent=35 // pred_region
          %s290 = sand.u32 %s33, 1
          %s291 = scalar_lea.sflag [#allocation5], %s290
          %s292 = sand.u32 %s33, 1
          %s293 = smul.addr %s292, 128
          %s294 = scalar_lea.vmem [#allocation4], %s293
          %s295 = smul.u32 16, %s23
          %s297 = ssub.s32 2048, 2048
          %298 = vsyncadd %s291, %s297
          %s299 = smul.addr %s295, 128
          %s300 = scalar_lea.hbm %s0, %s299
          %s301 = sshll.u32 %s294, 4
          %s302 = int_to_ptr.vmem [resolvable:$true] %s301
          %307 = dma.hbm_to_vmem [thread:$0]  %s300, 2048, %s302, %s291, 128, 128, 8
        $region40: #{tpu_custom_call.1} parent=35 // pred_fallthru
          _
        // Predicated region
        $region41: #{tpu_custom_call.1} parent=35 // pred_check
          %p308 = pneg %p69
        $region42: #{tpu_custom_call.1} parent=35 // pred_check_branch
          %310 = sbr.rel (%p308) target = $region44
        $region43: #{tpu_custom_call.1} parent=35 // pred_region
          %s311 = sand.u32 %s23, 1
          %s312 = scalar_lea.sflag [#allocation8], %s311
          %s313 = sand.u32 %s59, 1
          %s314 = scalar_lea.vmem [#allocation7], %s313
          %s316 = ssub.s32 16, 16
          %317 = vsyncadd %s312, %s316
          %s318 = smul.addr %s23, 16
          %s319 = scalar_lea.hbm %s1, %s318
          %s321 = sshll.u32 %s314, 4
          %s322 = int_to_ptr.vmem [resolvable:$true] %s321
          %324 = dma.hbm_to_vmem [thread:$0]  %s319, 16, %s322, %s312
        $region44: #{tpu_custom_call.1} parent=35 // pred_fallthru
          _
        // Predicated region
        $region45: #{tpu_custom_call.1} parent=35 // pred_check
          %p325 = pneg %p95
        $region46: #{tpu_custom_call.1} parent=35 // pred_check_branch
          %327 = sbr.rel (%p325) target = $region48
        $region47: #{tpu_custom_call.1} parent=35 // pred_region
          %p328 = scmp.lt.s32.totalorder %s23, 3
          %s329 = scalar_select %p328, %s23, 3
          %s330 = scalar_lea.vmem %s2, %s329
        $region48: #{tpu_custom_call.1} parent=35 // pred_fallthru
          _
      $region36: #{tpu_custom_call.1} parent=5 // pred_fallthru
        _
      %p331 = scmp.le.s32.totalorder 1, %s23
      %p332 = scmp.lt.s32.totalorder %s23, 5
      %p333 = pnand %p331, %p332
      %p334 = pneg %p333
      // Predicated region
      $region49: #{tpu_custom_call.1} parent=5 // pred_check
        _
      $region50: #{tpu_custom_call.1} parent=5 // pred_check_branch
        %336 = sbr.rel (%p333) target = $region52
      $region51: #{tpu_custom_call.1} parent=5 // pred_region
        %s337 = ssub.s32 %s23, 1
        %s338 = sand.u32 %s36, 1
        %s339 = scalar_lea.sflag [#allocation5], %s338
        %s340 = sand.u32 %s36, 1
        %s341 = smul.addr %s340, 128
        %s342 = scalar_lea.vmem [#allocation4], %s341
        // Predicated region
        $region53: #{tpu_custom_call.1} parent=51 // pred_check
          %p343 = pneg %p49
        $region54: #{tpu_custom_call.1} parent=51 // pred_check_branch
          %345 = sbr.rel (%p343) target = $region56
        $region55: #{tpu_custom_call.1} parent=51 // pred_region
          %346 = dma.done %s339, 2048
        $region56: #{tpu_custom_call.1} parent=51 // pred_fallthru
          _
        %s347 = sand.u32 %s28, 1
        %s348 = scalar_lea.sflag [#allocation8], %s347
        %s349 = sand.u32 %s62, 1
        %s350 = scalar_lea.vmem [#allocation7], %s349
        // Predicated region
        $region57: #{tpu_custom_call.1} parent=51 // pred_check
          %p351 = pneg %p75
        $region58: #{tpu_custom_call.1} parent=51 // pred_check_branch
          %353 = sbr.rel (%p351) target = $region60
        $region59: #{tpu_custom_call.1} parent=51 // pred_region
          %354 = dma.done %s348, 16
        $region60: #{tpu_custom_call.1} parent=51 // pred_fallthru
          _
        // Predicated region
        $region61: #{tpu_custom_call.1} parent=51 // pred_check
          %p355 = pneg %p122
        $region62: #{tpu_custom_call.1} parent=51 // pred_check_branch
          %357 = sbr.rel (%p355) target = $region64
        $region63: #{tpu_custom_call.1} parent=51 // pred_region
          %358 = dma.done [#allocation8], 16
        $region64: #{tpu_custom_call.1} parent=51 // pred_fallthru
          _
        // Predicated region
        $region65: #{tpu_custom_call.1} parent=51 // pred_check
          %p359 = pneg %p164
        $region66: #{tpu_custom_call.1} parent=51 // pred_check_branch
          %361 = sbr.rel (%p359) target = $region68
        $region67: #{tpu_custom_call.1} parent=51 // pred_region
          %362 = dma.done [#allocation11], 2048
        $region68: #{tpu_custom_call.1} parent=51 // pred_fallthru
          _
        // Predicated region
        $region69: #{tpu_custom_call.1} parent=51 // pred_check
          %p363 = pneg %p185
        $region70: #{tpu_custom_call.1} parent=51 // pred_check_branch
          %365 = sbr.rel (%p363) target = $region72
        $region71: #{tpu_custom_call.1} parent=51 // pred_region
          %366 = dma.done [#allocation11], 16
        $region72: #{tpu_custom_call.1} parent=51 // pred_fallthru
          _
        %s367 = sand.u32 %s36, 1
        %s368 = scalar_lea.sflag [#allocation5], %s367
        %s369 = sand.u32 %s36, 1
        %s370 = smul.addr %s369, 128
        %s371 = scalar_lea.vmem [#allocation4], %s370
        %p372 = pneg %p49
        %p373 = pneg %p46
        %s374 = sand.u32 %s28, 1
        %s375 = scalar_lea.sflag [#allocation8], %s374
        %s376 = sand.u32 %s62, 1
        %s377 = scalar_lea.vmem [#allocation7], %s376
        %p378 = pneg %p75
        %p379 = pneg %p72
        %p380 = scmp.lt.s32.totalorder %s28, 3
        %s381 = scalar_select %p380, %s28, 3
        %s382 = scalar_lea.vmem %s2, %s381
        %p383 = pneg %p101
        %p384 = pneg %p98
        %p385 = pneg %p122
        %p386 = pneg %p119
        %p387 = pneg %p143
        %p388 = pneg %p140
        %p389 = pneg %p164
        %p390 = pneg %p161
        %p391 = pneg %p185
        %p392 = pneg %p182
        %p393 = pneg %p206
        %p394 = pneg %p203
        %p395 = pneg %p227
        %p396 = pneg %p224
        %s397 = smul.u32 16, %s28
        %p398 = scmp.lt.s32.totalorder %s28, 3
        %s399 = scalar_select %p398, %s28, 3
        %s400 = scalar_lea.vmem %s2, %s399
        %p401 = scmp.eq.s32.totalorder %s28, 0
        // Predicated region
        $region73: #{tpu_custom_call.1} parent=51 // pred_check
          %p402 = pneg %p401
        $region74: #{tpu_custom_call.1} parent=51 // pred_check_branch
          %404 = sbr.rel (%p402) target = $region76
        $region75: #{tpu_custom_call.1} parent=51 // pred_region
          %405 = vst [vmem:[#allocation2] sm:$0xff] 0.0
        $region76: #{tpu_custom_call.1} parent=51 // pred_fallthru
          _
        %v406 = vld [vmem:[%s342] sm:$0xff]
        %v407 = vld [vmem:[%s342 + $0x8] sm:$0xff]
        %v408 = vld [vmem:[%s342 + $0x10] sm:$0xff]
        %v409 = vld [vmem:[%s342 + $0x18] sm:$0xff]
        %v410 = vld [vmem:[%s342 + $0x20] sm:$0xff]
        %v411 = vld [vmem:[%s342 + $0x28] sm:$0xff]
        %v412 = vld [vmem:[%s342 + $0x30] sm:$0xff]
        %v413 = vld [vmem:[%s342 + $0x38] sm:$0xff]
        %v414 = vld [vmem:[%s342 + $0x40] sm:$0xff]
        %v415 = vld [vmem:[%s342 + $0x48] sm:$0xff]
        %v416 = vld [vmem:[%s342 + $0x50] sm:$0xff]
        %v417 = vld [vmem:[%s342 + $0x58] sm:$0xff]
        %v418 = vld [vmem:[%s342 + $0x60] sm:$0xff]
        %v419 = vld [vmem:[%s342 + $0x68] sm:$0xff]
        %v420 = vld [vmem:[%s342 + $0x70] sm:$0xff]
        %v421 = vld [vmem:[%s342 + $0x78] sm:$0xff]
        %v422 = vld [vmem:[#allocation9] sm:$0x1]
        %v424 = vlaneseq
        %v425 = vshrl.u32 %v424, 7
        %v426 = vsub.s32 0, %v425
        %v427 = vrot.slane %v422, %v426
        %v429 = vmul.f32 %v406, %v427
        %v430 = vmul.f32 %v407, %v427
        %v431 = vmul.f32 %v408, %v427
        %v432 = vmul.f32 %v409, %v427
        %v433 = vmul.f32 %v410, %v427
        %v434 = vmul.f32 %v411, %v427
        %v435 = vmul.f32 %v412, %v427
        %v436 = vmul.f32 %v413, %v427
        %v437 = vmul.f32 %v414, %v427
        %v438 = vmul.f32 %v415, %v427
        %v439 = vmul.f32 %v416, %v427
        %v440 = vmul.f32 %v417, %v427
        %v441 = vmul.f32 %v418, %v427
        %v442 = vmul.f32 %v419, %v427
        %v443 = vmul.f32 %v420, %v427
        %v444 = vmul.f32 %v421, %v427
        %445 = vadd.xlane.f32.xlu0 %v429
        %v446 = vpop.xlane.xlu0 %445
        %447 = vadd.xlane.f32.xlu0 %v430
        %v448 = vpop.xlane.xlu0 %447
        %449 = vadd.xlane.f32.xlu0 %v431
        %v450 = vpop.xlane.xlu0 %449
        %451 = vadd.xlane.f32.xlu0 %v432
        %v452 = vpop.xlane.xlu0 %451
        %453 = vadd.xlane.f32.xlu0 %v433
        %v454 = vpop.xlane.xlu0 %453
        %455 = vadd.xlane.f32.xlu0 %v434
        %v456 = vpop.xlane.xlu0 %455
        %457 = vadd.xlane.f32.xlu0 %v435
        %v458 = vpop.xlane.xlu0 %457
        %459 = vadd.xlane.f32.xlu0 %v436
        %v460 = vpop.xlane.xlu0 %459
        %461 = vadd.xlane.f32.xlu0 %v437
        %v462 = vpop.xlane.xlu0 %461
        %463 = vadd.xlane.f32.xlu0 %v438
        %v464 = vpop.xlane.xlu0 %463
        %465 = vadd.xlane.f32.xlu0 %v439
        %v466 = vpop.xlane.xlu0 %465
        %467 = vadd.xlane.f32.xlu0 %v440
        %v468 = vpop.xlane.xlu0 %467
        %469 = vadd.xlane.f32.xlu0 %v441
        %v470 = vpop.xlane.xlu0 %469
        %471 = vadd.xlane.f32.xlu0 %v442
        %v472 = vpop.xlane.xlu0 %471
        %473 = vadd.xlane.f32.xlu0 %v443
        %v474 = vpop.xlane.xlu0 %473
        %475 = vadd.xlane.f32.xlu0 %v444
        %v476 = vpop.xlane.xlu0 %475
        %s477 = sld [smem:[#allocation3]]
        %v478 = vstv %s477
        %v479 = vadd.f32 %v446, %v478
        %v480 = vadd.f32 %v448, %v478
        %v481 = vadd.f32 %v450, %v478
        %v482 = vadd.f32 %v452, %v478
        %v483 = vadd.f32 %v454, %v478
        %v484 = vadd.f32 %v456, %v478
        %v485 = vadd.f32 %v458, %v478
        %v486 = vadd.f32 %v460, %v478
        %v487 = vadd.f32 %v462, %v478
        %v488 = vadd.f32 %v464, %v478
        %v489 = vadd.f32 %v466, %v478
        %v490 = vadd.f32 %v468, %v478
        %v491 = vadd.f32 %v470, %v478
        %v492 = vadd.f32 %v472, %v478
        %v493 = vadd.f32 %v474, %v478
        %v494 = vadd.f32 %v476, %v478
        %v495 = vsub.f32 0.0, %v479
        %v496 = vsub.f32 0.0, %v480
        %v497 = vsub.f32 0.0, %v481
        %v498 = vsub.f32 0.0, %v482
        %v499 = vsub.f32 0.0, %v483
        %v500 = vsub.f32 0.0, %v484
        %v501 = vsub.f32 0.0, %v485
        %v502 = vsub.f32 0.0, %v486
        %v503 = vsub.f32 0.0, %v487
        %v504 = vsub.f32 0.0, %v488
        %v505 = vsub.f32 0.0, %v489
        %v506 = vsub.f32 0.0, %v490
        %v507 = vsub.f32 0.0, %v491
        %v508 = vsub.f32 0.0, %v492
        %v509 = vsub.f32 0.0, %v493
        %v510 = vsub.f32 0.0, %v494
        %v511 = vmul.f32 %v495, 1.442695
        %v512 = vpow.pop %v511
        %v513 = vmul.f32 %v496, 1.442695
        %v514 = vpow.pop %v513
        %v515 = vmul.f32 %v497, 1.442695
        %v516 = vpow.pop %v515
        %v517 = vmul.f32 %v498, 1.442695
        %v518 = vpow.pop %v517
        %v519 = vmul.f32 %v499, 1.442695
        %v520 = vpow.pop %v519
        %v521 = vmul.f32 %v500, 1.442695
        %v522 = vpow.pop %v521
        %v523 = vmul.f32 %v501, 1.442695
        %v524 = vpow.pop %v523
        %v525 = vmul.f32 %v502, 1.442695
        %v526 = vpow.pop %v525
        %v527 = vmul.f32 %v503, 1.442695
        %v528 = vpow.pop %v527
        %v529 = vmul.f32 %v504, 1.442695
        %v530 = vpow.pop %v529
        %v531 = vmul.f32 %v505, 1.442695
        %v532 = vpow.pop %v531
        %v533 = vmul.f32 %v506, 1.442695
        %v534 = vpow.pop %v533
        %v535 = vmul.f32 %v507, 1.442695
        %v536 = vpow.pop %v535
        %v537 = vmul.f32 %v508, 1.442695
        %v538 = vpow.pop %v537
        %v539 = vmul.f32 %v509, 1.442695
        %v540 = vpow.pop %v539
        %v541 = vmul.f32 %v510, 1.442695
        %v542 = vpow.pop %v541
        %v543 = vadd.f32 %v512, 1.0
        %v544 = vadd.f32 %v514, 1.0
        %v545 = vadd.f32 %v516, 1.0
        %v546 = vadd.f32 %v518, 1.0
        %v547 = vadd.f32 %v520, 1.0
        %v548 = vadd.f32 %v522, 1.0
        %v549 = vadd.f32 %v524, 1.0
        %v550 = vadd.f32 %v526, 1.0
        %v551 = vadd.f32 %v528, 1.0
        %v552 = vadd.f32 %v530, 1.0
        %v553 = vadd.f32 %v532, 1.0
        %v554 = vadd.f32 %v534, 1.0
        %v555 = vadd.f32 %v536, 1.0
        %v556 = vadd.f32 %v538, 1.0
        %v557 = vadd.f32 %v540, 1.0
        %v558 = vadd.f32 %v542, 1.0
        %v559 = vrcp.pop %v543
        %v560 = vmul.f32 1.0, %v559
        %v561 = vrcp.pop %v544
        %v562 = vmul.f32 1.0, %v561
        %v563 = vrcp.pop %v545
        %v564 = vmul.f32 1.0, %v563
        %v565 = vrcp.pop %v546
        %v566 = vmul.f32 1.0, %v565
        %v567 = vrcp.pop %v547
        %v568 = vmul.f32 1.0, %v567
        %v569 = vrcp.pop %v548
        %v570 = vmul.f32 1.0, %v569
        %v571 = vrcp.pop %v549
        %v572 = vmul.f32 1.0, %v571
        %v573 = vrcp.pop %v550
        %v574 = vmul.f32 1.0, %v573
        %v575 = vrcp.pop %v551
        %v576 = vmul.f32 1.0, %v575
        %v577 = vrcp.pop %v552
        %v578 = vmul.f32 1.0, %v577
        %v579 = vrcp.pop %v553
        %v580 = vmul.f32 1.0, %v579
        %v581 = vrcp.pop %v554
        %v582 = vmul.f32 1.0, %v581
        %v583 = vrcp.pop %v555
        %v584 = vmul.f32 1.0, %v583
        %v585 = vrcp.pop %v556
        %v586 = vmul.f32 1.0, %v585
        %v587 = vrcp.pop %v557
        %v588 = vmul.f32 1.0, %v587
        %v589 = vrcp.pop %v558
        %v590 = vmul.f32 1.0, %v589
        %v591 = vmul.f32 %v560, %v406
        %v592 = vmul.f32 %v562, %v407
        %v593 = vmul.f32 %v564, %v408
        %v594 = vmul.f32 %v566, %v409
        %v595 = vmul.f32 %v568, %v410
        %v596 = vmul.f32 %v570, %v411
        %v597 = vmul.f32 %v572, %v412
        %v598 = vmul.f32 %v574, %v413
        %v599 = vmul.f32 %v576, %v414
        %v600 = vmul.f32 %v578, %v415
        %v601 = vmul.f32 %v580, %v416
        %v602 = vmul.f32 %v582, %v417
        %v603 = vmul.f32 %v584, %v418
        %v604 = vmul.f32 %v586, %v419
        %v605 = vmul.f32 %v588, %v420
        %v606 = vmul.f32 %v590, %v421
        %v607 = vlaneseq
        %v608 = vshrl.u32 %v607, 7
        %v609 = vld [vmem:[%s350] sm:$0x1]
        %v610 = vlaneseq
        %v611 = vshrl.u32 %v610, 7
        %v612 = vsub.s32 0, %v611
        %v613 = vrot.slane %v609, %v612
        %vm614 = vcmp.eq.s32.totalorder %v608, %v613
        %v615 = vld [vmem:[%s400] sm:$0x1]
        %v617 = vlaneseq
        %v618 = vshrl.u32 %v617, 7
        %v619 = vsub.s32 0, %v618
        %v620 = vrot.slane %v615, %v619
        %v622 = vsel %vm614, %v620, 0.0
        %v623 = vld [vmem:[#allocation2] sm:$0xff]
        %624 = vmatprep.subr.mxu0 0.0
        %625 = vmatpush1.msra.mxu0 %v606
        %626 = vmatprep.subr.mxu0 0.0
        %627 = vmatpush1.msra.mxu0 %v605
        %628 = vmatprep.subr.mxu0 0.0
        %629 = vmatpush1.msra.mxu0 %v604
        %630 = vmatprep.subr.mxu0 0.0
        %631 = vmatpush1.msra.mxu0 %v603
        %632 = vmatprep.subr.mxu0 0.0
        %633 = vmatpush1.msra.mxu0 %v602
        %634 = vmatprep.subr.mxu0 0.0
        %635 = vmatpush1.msra.mxu0 %v601
        %636 = vmatprep.subr.mxu0 0.0
        %637 = vmatpush1.msra.mxu0 %v600
        %638 = vmatprep.subr.mxu0 0.0
        %639 = vmatpush1.msra.mxu0 %v599
        %640 = vmatprep.subr.mxu0 0.0
        %641 = vmatpush1.msra.mxu0 %v598
        %642 = vmatprep.subr.mxu0 0.0
        %643 = vmatpush1.msra.mxu0 %v597
        %644 = vmatprep.subr.mxu0 0.0
        %645 = vmatpush1.msra.mxu0 %v596
        %646 = vmatprep.subr.mxu0 0.0
        %647 = vmatpush1.msra.mxu0 %v595
        %648 = vmatprep.subr.mxu0 0.0
        %649 = vmatpush1.msra.mxu0 %v594
        %650 = vmatprep.subr.mxu0 0.0
        %651 = vmatpush1.msra.mxu0 %v593
        %652 = vmatprep.subr.mxu0 0.0
        %653 = vmatpush1.msra.mxu0 %v592
        %654 = vmatprep.subr.mxu0 0.0
        %655 = vmatpush1.msra.mxu0 %v591
        %656 = vmatprep.subr.mxu0 0.0
        %657 = vmatpush2.msra.mxu0 0.0
        %658 = vmatprep.subr.mxu0 0.0
        %659 = vmatpush2.msra.mxu0 0.0
        %660 = vmatprep.subr.mxu0 0.0
        %661 = vmatpush2.msra.mxu0 0.0
        %662 = vmatprep.subr.mxu0 0.0
        %663 = vmatpush2.msra.mxu0 0.0
        %664 = vmatprep.subr.mxu0 0.0
        %665 = vmatpush2.msra.mxu0 0.0
        %666 = vmatprep.subr.mxu0 0.0
        %667 = vmatpush2.msra.mxu0 0.0
        %668 = vmatprep.subr.mxu0 0.0
        %669 = vmatpush2.msra.mxu0 0.0
        %670 = vmatprep.subr.mxu0 0.0
        %671 = vmatpush2.msra.mxu0 0.0
        %672 = vmatprep.subr.mxu0 0.0
        %673 = vmatpush2.msra.mxu0 0.0
        %674 = vmatprep.subr.mxu0 0.0
        %675 = vmatpush2.msra.mxu0 0.0
        %676 = vmatprep.subr.mxu0 0.0
        %677 = vmatpush2.msra.mxu0 0.0
        %678 = vmatprep.subr.mxu0 0.0
        %679 = vmatpush2.msra.mxu0 0.0
        %680 = vmatprep.subr.mxu0 0.0
        %681 = vmatpush2.msra.mxu0 0.0
        %682 = vmatprep.subr.mxu0 0.0
        %683 = vmatpush2.msra.mxu0 0.0
        %684 = vmatprep.subr.mxu0 0.0
        %685 = vmatpush2.msra.mxu0 0.0
        %686 = vmatprep.subr.mxu0 0.0
        %687 = vmatpush2.msra.mxu0 0.0
        %688 = vmatprep.mubr.f32.mxu0 0.0
        %689 = vmatmul.mubr.f32.gmra.mxu0 %v622
        %v690 = vpop.f32.mrf.mxu0
        %v691 = vadd.f32 0.0, %v690
        %v692 = vpop.f32.mrf.mxu0
        %693 = vdwg.mxu0
        %v694 = vadd.f32 %v623, %v691
        %695 = vst [vmem:[#allocation2] sm:$0xff] %v694
        %p696 = scmp.eq.s32.totalorder %s28, 3
        // Predicated region
        $region77: #{tpu_custom_call.1} parent=51 // pred_check
          %p697 = pneg %p696
        $region78: #{tpu_custom_call.1} parent=51 // pred_check_branch
          %699 = sbr.rel (%p697) target = $region80
        $region79: #{tpu_custom_call.1} parent=51 // pred_region
          %v700 = vld [vmem:[#allocation2] sm:$0xff]
          %v701 = vld [vmem:[#allocation10] sm:$0xff]
          %v702 = vld [vmem:[#allocation10 + $0x8] sm:$0xff]
          %v703 = vld [vmem:[#allocation10 + $0x10] sm:$0xff]
          %v704 = vld [vmem:[#allocation10 + $0x18] sm:$0xff]
          %v705 = vld [vmem:[#allocation10 + $0x20] sm:$0xff]
          %v706 = vld [vmem:[#allocation10 + $0x28] sm:$0xff]
          %v707 = vld [vmem:[#allocation10 + $0x30] sm:$0xff]
          %v708 = vld [vmem:[#allocation10 + $0x38] sm:$0xff]
          %v709 = vld [vmem:[#allocation10 + $0x40] sm:$0xff]
          %v710 = vld [vmem:[#allocation10 + $0x48] sm:$0xff]
          %v711 = vld [vmem:[#allocation10 + $0x50] sm:$0xff]
          %v712 = vld [vmem:[#allocation10 + $0x58] sm:$0xff]
          %v713 = vld [vmem:[#allocation10 + $0x60] sm:$0xff]
          %v714 = vld [vmem:[#allocation10 + $0x68] sm:$0xff]
          %v715 = vld [vmem:[#allocation10 + $0x70] sm:$0xff]
          %v716 = vld [vmem:[#allocation10 + $0x78] sm:$0xff]
          %v717 = vld [vmem:[#allocation12] sm:$0x1]
          %v719 = vlaneseq
          %v720 = vshrl.u32 %v719, 7
          %v721 = vsub.s32 0, %v720
          %v722 = vrot.slane %v717, %v721
          %724 = vmatprep.subr.mxu0 0.0
          %725 = vmatpush1.msra.mxu0 %v716
          %726 = vmatprep.subr.mxu0 0.0
          %727 = vmatpush1.msra.mxu0 %v715
          %728 = vmatprep.subr.mxu0 0.0
          %729 = vmatpush1.msra.mxu0 %v714
          %730 = vmatprep.subr.mxu0 0.0
          %731 = vmatpush1.msra.mxu0 %v713
          %732 = vmatprep.subr.mxu0 0.0
          %733 = vmatpush1.msra.mxu0 %v712
          %734 = vmatprep.subr.mxu0 0.0
          %735 = vmatpush1.msra.mxu0 %v711
          %736 = vmatprep.subr.mxu0 0.0
          %737 = vmatpush1.msra.mxu0 %v710
          %738 = vmatprep.subr.mxu0 0.0
          %739 = vmatpush1.msra.mxu0 %v709
          %740 = vmatprep.subr.mxu0 0.0
          %741 = vmatpush1.msra.mxu0 %v708
          %742 = vmatprep.subr.mxu0 0.0
          %743 = vmatpush1.msra.mxu0 %v707
          %744 = vmatprep.subr.mxu0 0.0
          %745 = vmatpush1.msra.mxu0 %v706
          %746 = vmatprep.subr.mxu0 0.0
          %747 = vmatpush1.msra.mxu0 %v705
          %748 = vmatprep.subr.mxu0 0.0
          %749 = vmatpush1.msra.mxu0 %v704
          %750 = vmatprep.subr.mxu0 0.0
          %751 = vmatpush1.msra.mxu0 %v703
          %752 = vmatprep.subr.mxu0 0.0
          %753 = vmatpush1.msra.mxu0 %v702
          %754 = vmatprep.subr.mxu0 0.0
          %755 = vmatpush1.msra.mxu0 %v701
          %756 = vmatprep.subr.mxu0 0.0
          %757 = vmatpush2.msra.mxu0 0.0
          %758 = vmatprep.subr.mxu0 0.0
          %759 = vmatpush2.msra.mxu0 0.0
          %760 = vmatprep.subr.mxu0 0.0
          %761 = vmatpush2.msra.mxu0 0.0
          %762 = vmatprep.subr.mxu0 0.0
          %763 = vmatpush2.msra.mxu0 0.0
          %764 = vmatprep.subr.mxu0 0.0
          %765 = vmatpush2.msra.mxu0 0.0
          %766 = vmatprep.subr.mxu0 0.0
          %767 = vmatpush2.msra.mxu0 0.0
          %768 = vmatprep.subr.mxu0 0.0
          %769 = vmatpush2.msra.mxu0 0.0
          %770 = vmatprep.subr.mxu0 0.0
          %771 = vmatpush2.msra.mxu0 0.0
          %772 = vmatprep.subr.mxu0 0.0
          %773 = vmatpush2.msra.mxu0 0.0
          %774 = vmatprep.subr.mxu0 0.0
          %775 = vmatpush2.msra.mxu0 0.0
          %776 = vmatprep.subr.mxu0 0.0
          %777 = vmatpush2.msra.mxu0 0.0
          %778 = vmatprep.subr.mxu0 0.0
          %779 = vmatpush2.msra.mxu0 0.0
          %780 = vmatprep.subr.mxu0 0.0
          %781 = vmatpush2.msra.mxu0 0.0
          %782 = vmatprep.subr.mxu0 0.0
          %783 = vmatpush2.msra.mxu0 0.0
          %784 = vmatprep.subr.mxu0 0.0
          %785 = vmatpush2.msra.mxu0 0.0
          %786 = vmatprep.subr.mxu0 0.0
          %787 = vmatpush2.msra.mxu0 0.0
          %788 = vmatprep.mubr.f32.mxu0 0.0
          %789 = vmatmul.mubr.f32.gmra.mxu0 %v700
          %v790 = vpop.f32.mrf.mxu0
          %v791 = vadd.f32 %v722, %v790
          %v792 = vpop.f32.mrf.mxu0
          %793 = vdwg.mxu0
          %v794 = vlaneseq
          %v795 = vand.u32 %v794, 127
          %vm796 = vcmp.lt.s32.totalorder %v795, 8
          %v797 = vsel %vm796, %v791, -1e+30
          %798 = vmax.xlane.f32.xlu0 %v797
          %v799 = vpop.xlane.xlu0 %798
          %v800 = vsub.f32 %v797, %v799
          %v801 = vmul.f32 %v800, 1.442695
          %v802 = vpow.pop %v801
          %803 = vadd.xlane.f32.xlu0 %v802
          %v804 = vpop.xlane.xlu0 %803
          %v805 = vrcp.pop %v804
          %v806 = vmul.f32 %v802, %v805
          %v807 = vsel %vm796, %v806, -1e+30
          %808 = vmax.xlane.f32.xlu0 %v807
          %v809 = vpop.xlane.xlu0 %808
          %v810 = vsub.f32 %v807, %v809
          %v811 = vmul.f32 %v810, 1.442695
          %v812 = vpow.pop %v811
          %813 = vadd.xlane.f32.xlu0 %v812
          %v814 = vpop.xlane.xlu0 %813
          %v815 = vlog2.pop %v814
          %v816 = vmul.f32 %v815, 0.6931472
          %v817 = vsub.f32 %v810, %v816
          %v818 = vld [vmem:[%s7] sm:$0xff]
          %v819 = vmul.f32 %v818, %v817
          %820 = vadd.xlane.f32.xlu0 %v819
          %v821 = vpop.xlane.xlu0 %820
          %v822 = vsub.f32 0.0, %v821
          %v823 = vrot.slane %v822, 4
          %v824 = vadd.f32 %v822, %v823
          %v825 = vrot.slane %v824, 2
          %v826 = vadd.f32 %v824, %v825
          %v827 = vrot.slane %v826, 1
          %v828 = vadd.f32 %v826, %v827
          %v829 = vmul.f32 %v828, 0.25
          %vm830 = vcmask 0
          %831 = vst.msk [vmem:[#allocation13] sm:$0x1] %vm830, %v829
        $region80: #{tpu_custom_call.1} parent=51 // pred_fallthru
          _
        // Predicated region
        $region81: #{tpu_custom_call.1} parent=51 // pred_check
          %p832 = pneg %p224
        $region82: #{tpu_custom_call.1} parent=51 // pred_check_branch
          %834 = sbr.rel (%p832) target = $region84
        $region83: #{tpu_custom_call.1} parent=51 // pred_region
          %s836 = ssub.s32 16, 16
          %837 = vsyncadd [#allocation6], %s836
          %s839 = sshll.u32 [#allocation13], 4
          %s840 = int_to_ptr.vmem [resolvable:$true] %s839
          %842 = dma.vmem_to_hbm [thread:$0]  %s840, 16, %s8, [#allocation6]
        $region84: #{tpu_custom_call.1} parent=51 // pred_fallthru
          _
        // Predicated region
        $region85: #{tpu_custom_call.1} parent=51 // pred_check
          %p843 = pneg %p224
        $region86: #{tpu_custom_call.1} parent=51 // pred_check_branch
          %845 = sbr.rel (%p843) target = $region88
        $region87: #{tpu_custom_call.1} parent=51 // pred_region
          %846 = dma.done [#allocation6], 16
        $region88: #{tpu_custom_call.1} parent=51 // pred_fallthru
          _
      $region52: #{tpu_custom_call.1} parent=5 // pred_fallthru
        _
      %p847 = scmp.le.s32.totalorder 2, %s23
      // Predicated region
      $region89: #{tpu_custom_call.1} parent=5 // pred_check
        %p848 = pneg %p847
      $region90: #{tpu_custom_call.1} parent=5 // pred_check_branch
        %850 = sbr.rel (%p848) target = $region92
      $region91: #{tpu_custom_call.1} parent=5 // pred_region
        %s851 = ssub.s32 %s23, 2
      $region92: #{tpu_custom_call.1} parent=5 // pred_fallthru
        _
    $region6: #{tpu_custom_call.1} parent=1 // loop_footer
      %s27 = sadd.s32 1, %s23
    $region7: #{tpu_custom_call.1} parent=1 // loop_footer_branch
      %22 = sbr.rel target = $region3
    $region8: #{tpu_custom_call.1} parent=1 // loop_exit
      _
    %852 = vsyncpa [#allocation5], 1
    %s853 = scalar_lea.sflag [#allocation5], 1
    %854 = vsyncpa %s853, 1
    %855 = vsyncpa [#allocation8], 1
    %s856 = scalar_lea.sflag [#allocation8], 1
    %857 = vsyncpa %s856, 1
    %858 = vsyncpa [#allocation11], 1
    %859 = vsyncpa [#allocation6], 1
    %s860 = scalar_lea.sflag [#allocation6], 1
    %861 = vsyncpa %s860, 1

</llo_original>
